<compile_context>
chip_gen: v7x
topology: tpu7x:2x2x1
jax: 0.10.0
libtpu: 0.0.40
codegen_flags: <defaults>
</compile_context>

<pallas_src>
import jax
import jax.numpy as jnp
from jax.experimental import pallas as pl
from jax.experimental.pallas import tpu as pltpu

TH = 0.025

# Trace-time constant folding of the scale math.
_S1_IN = 127.0 / TH
_S1_OUT = TH / 127.0
_S2_IN = 127.0 / (1.0 - TH)
_S2_OUT = (1.0 - TH) / 127.0

# Keep LANES <= 512: wider only increases the chance of needing the tail path.
_LANE_CANDIDATES = (512, 384, 256, 128)
_MIN_GRID_STEPS = 4  # let v7x megacore shard the "parallel" grid axis


def _softmax_quant_kernel(x_ref, x1_ref, x2_ref):
    x = x_ref[...].astype(jnp.float32)
    # branch 1: quantize in [0, th]   (one mul, one max+min, one round, one mul)
    x1 = jnp.round(jnp.clip(x * _S1_IN, 0.0, 127.0)) * _S1_OUT
    # branch 2: quantize in [th, 1.0]
    x2 = jnp.round(jnp.clip((x - TH) * _S2_IN, 0.0, 127.0)) * _S2_OUT
    x1_ref[...] = x1.astype(x1_ref.dtype)
    x2_ref[...] = x2.astype(x2_ref.dtype)


def _quant_jnp(x):
    """Plain-jnp fallback for tiny tails (<128 elements)."""
    xf = x.astype(jnp.float32)
    x1 = jnp.round(jnp.clip(xf * _S1_IN, 0.0, 127.0)) * _S1_OUT
    x2 = jnp.round(jnp.clip((xf - TH) * _S2_IN, 0.0, 127.0)) * _S2_OUT
    return x1.astype(x.dtype), x2.astype(x.dtype)


def _quant_pallas_2d(x2d, *, target_block_bytes):
    rows, lanes = x2d.shape
    dtype = x2d.dtype
    itemsize = jnp.dtype(dtype).itemsize
    # Sublane multiple is dtype-aware (packed sublanes for sub-32-bit dtypes):
    # 8 for f32, 16 for bf16, 32 for int8/fp8.
    sub = max(8, 32 // itemsize)

    # Block rows sized so one input block is ~target_block_bytes.
    block_rows = max(sub, (target_block_bytes // (lanes * itemsize)) // sub * sub)

    if rows <= sub:
        # Full-extent block (allowed even when not sublane-aligned).
        tile_rows = rows
    elif rows < _MIN_GRID_STEPS * block_rows:
        # Small/medium input: split into >= _MIN_GRID_STEPS steps (when
        # possible) so both v7x TensorCores get work. Pallas masks the
        # partial last block (safe: elementwise only).
        steps = min(_MIN_GRID_STEPS, pl.cdiv(rows, sub))
        tile_rows = min(rows, pl.cdiv(pl.cdiv(rows, steps), sub) * sub)
    else:
        tile_rows = block_rows

    grid = (pl.cdiv(rows, tile_rows),)
    spec = pl.BlockSpec((tile_rows, lanes), lambda i: (i, 0))

    n = rows * lanes
    cost = pl.CostEstimate(
        flops=11 * n,
        transcendentals=0,
        bytes_accessed=3 * n * itemsize,  # 1 read + 2 writes
    )

    return pl.pallas_call(
        _softmax_quant_kernel,
        out_shape=(
            jax.ShapeDtypeStruct((rows, lanes), dtype),
            jax.ShapeDtypeStruct((rows, lanes), dtype),
        ),
        grid_spec=pltpu.PrefetchScalarGridSpec(
            num_scalar_prefetch=0,
            grid=grid,
            in_specs=[spec],
            out_specs=(spec, spec),
        ),
        compiler_params=pltpu.CompilerParams(
            dimension_semantics=("parallel",),
            # 24 MiB of pipeline buffers + elementwise scratch; <= v7x 64 MiB/TC,
            # explicit override needed on v5e (16 MiB scoped default).
            vmem_limit_bytes=48 << 20,
        ),
        cost_estimate=cost,
    )(x2d)


def softmax_quantizer(x, *, target_block_bytes=4 << 20):
    """Returns (x1, x2) with the same shape/dtype as x (SoftmaxQuantizer.forward)."""
    orig_shape = x.shape
    flat = x.reshape(-1)
    n = flat.shape[0]

    # Main (kernel) part: the largest 128-multiple prefix — no padding, no
    # output slicing in the common case. The <128-element tail (rare) is
    # computed inline with jnp instead of padding whole arrays.
    n_main = (n // 128) * 128

    if n_main == 0:
        x1, x2 = _quant_jnp(flat)
        return x1.reshape(orig_shape), x2.reshape(orig_shape)

    lanes = next(c for c in _LANE_CANDIDATES if n_main % c == 0)
    rows = n_main // lanes

    if n_main == n:
        main = flat.reshape(rows, lanes)
        x1_2d, x2_2d = _quant_pallas_2d(main, target_block_bytes=target_block_bytes)
        return x1_2d.reshape(orig_shape), x2_2d.reshape(orig_shape)

    main = flat[:n_main].reshape(rows, lanes)
    x1_2d, x2_2d = _quant_pallas_2d(main, target_block_bytes=target_block_bytes)
    t1, t2 = _quant_jnp(flat[n_main:])
    x1 = jnp.concatenate([x1_2d.reshape(-1), t1]).reshape(orig_shape)
    x2 = jnp.concatenate([x2_2d.reshape(-1), t2]).reshape(orig_shape)
    return x1, x2


def _reference(x, th=TH):
    xf = x.astype(jnp.float32)
    x1 = jnp.round(jnp.clip(xf * 127.0 / th, 0.0, 127.0)) / 127.0 * th
    x2 = jnp.round(jnp.clip((xf - th) * 127.0 / (1.0 - th), 0.0, 127.0)) / 127.0 * (1.0 - th)
    return x1.astype(x.dtype), x2.astype(x.dtype)


def _assert_close(out, ref, step, name):
    # Constant folding (x * (127/th) vs x * 127 / th) can shift a value sitting
    # exactly on a round-half boundary by one quantization step; allow that for
    # a vanishingly small fraction of elements, require exactness elsewhere.
    diff = jnp.abs(out.astype(jnp.float32) - ref.astype(jnp.float32))
    assert bool(jnp.all(diff <= step + 1e-6)), f"{name}: mismatch beyond one quant step"
    frac_exact = float(jnp.mean((diff <= 1e-6).astype(jnp.float32)))
    assert frac_exact >= 0.999, f"{name}: too many boundary flips ({frac_exact})"


if __name__ == "__main__":
    key = jax.random.PRNGKey(0)
    # Softmax-like input in [0, 1], NCHW layout: (batch=2, channels=4, 16, 16)
    x = jax.random.uniform(key, (2, 4, 16, 16), dtype=jnp.float32)

    x1, x2 = softmax_quantizer(x)
    jax.block_until_ready((x1, x2))

    r1, r2 = _reference(x)
    assert x1.shape == x.shape and x2.shape == x.shape
    assert x1.dtype == x.dtype and x2.dtype == x.dtype
    _assert_close(x1, r1, TH / 127.0, "x1")
    _assert_close(x2, r2, (1.0 - TH) / 127.0, "x2")

    print("KERNEL_OK")
</pallas_src>

<mosaic_0001>
module attributes {stable_mosaic.version = 11 : i64} {
  func.func @_softmax_quant_kernel(%arg0: i32, %arg1: memref<4x512xf32, #tpu.memory_space<vmem>>, %arg2: memref<4x512xf32, #tpu.memory_space<vmem>>, %arg3: memref<4x512xf32, #tpu.memory_space<vmem>>) attributes {dimension_semantics = [#tpu.dimension_semantics<parallel>], iteration_bounds = array<i64: 1>, scalar_prefetch = 0 : i64, scratch_operands = 0 : i64, tpu.core_type = #tpu.core_type<tc>, window_params = [{transform_indices = @transform_0, window_bounds = array<i64: 4, 512>}, {transform_indices = @transform_1, window_bounds = array<i64: 4, 512>}, {transform_indices = @transform_2, window_bounds = array<i64: 4, 512>}]} {
    %c0 = arith.constant 0 : index
    %c0_0 = arith.constant 0 : index
    %0 = vector.load %arg1[%c0, %c0_0] : memref<4x512xf32, #tpu.memory_space<vmem>>, vector<4x512xf32>
    %cst = arith.constant 5.080000e+03 : f32
    %1 = vector.broadcast %cst : f32 to vector<4x512xf32>
    %2 = arith.mulf %0, %1 : vector<4x512xf32>
    %cst_1 = arith.constant 0.000000e+00 : f32
    %cst_2 = arith.constant 1.270000e+02 : f32
    %3 = vector.broadcast %cst_1 : f32 to vector<4x512xf32>
    %4 = arith.maximumf %3, %2 : vector<4x512xf32>
    %5 = vector.broadcast %cst_2 : f32 to vector<4x512xf32>
    %6 = arith.minimumf %5, %4 : vector<4x512xf32>
    %7 = math.roundeven %6 : vector<4x512xf32>
    %cst_3 = arith.constant 1.96850393E-4 : f32
    %8 = vector.broadcast %cst_3 : f32 to vector<4x512xf32>
    %9 = arith.mulf %7, %8 : vector<4x512xf32>
    %cst_4 = arith.constant 2.500000e-02 : f32
    %10 = vector.broadcast %cst_4 : f32 to vector<4x512xf32>
    %11 = arith.subf %0, %10 : vector<4x512xf32>
    %cst_5 = arith.constant 130.256409 : f32
    %12 = vector.broadcast %cst_5 : f32 to vector<4x512xf32>
    %13 = arith.mulf %11, %12 : vector<4x512xf32>
    %cst_6 = arith.constant 0.000000e+00 : f32
    %cst_7 = arith.constant 1.270000e+02 : f32
    %14 = vector.broadcast %cst_6 : f32 to vector<4x512xf32>
    %15 = arith.maximumf %14, %13 : vector<4x512xf32>
    %16 = vector.broadcast %cst_7 : f32 to vector<4x512xf32>
    %17 = arith.minimumf %16, %15 : vector<4x512xf32>
    %18 = math.roundeven %17 : vector<4x512xf32>
    %cst_8 = arith.constant 0.00767716533 : f32
    %19 = vector.broadcast %cst_8 : f32 to vector<4x512xf32>
    %20 = arith.mulf %18, %19 : vector<4x512xf32>
    %c0_9 = arith.constant 0 : index
    %c0_10 = arith.constant 0 : index
    %21 = vector.load %arg2[%c0_9, %c0_10] : memref<4x512xf32, #tpu.memory_space<vmem>>, vector<4x512xf32>
    tpu.vector_store %arg2[%c0_9, %c0_10], %9 {strides = array<i32>} : memref<4x512xf32, #tpu.memory_space<vmem>>, vector<4x512xf32>,
    %c0_11 = arith.constant 0 : index
    %c0_12 = arith.constant 0 : index
    %22 = vector.load %arg3[%c0_11, %c0_12] : memref<4x512xf32, #tpu.memory_space<vmem>>, vector<4x512xf32>
    tpu.vector_store %arg3[%c0_11, %c0_12], %20 {strides = array<i32>} : memref<4x512xf32, #tpu.memory_space<vmem>>, vector<4x512xf32>,
    return
  }
  func.func @transform_0(%arg0: i32) -> (i32, i32) {
    %c0_i32 = arith.constant 0 : i32
    %c0_i32_0 = arith.constant 0 : i32
    return %arg0, %c0_i32 : i32, i32
  }
  func.func @transform_1(%arg0: i32) -> (i32, i32) {
    %c0_i32 = arith.constant 0 : i32
    %c0_i32_0 = arith.constant 0 : i32
    return %arg0, %c0_i32 : i32, i32
  }
  func.func @transform_2(%arg0: i32) -> (i32, i32) {
    %c0_i32 = arith.constant 0 : i32
    %c0_i32_0 = arith.constant 0 : i32
    return %arg0, %c0_i32 : i32, i32
  }
}

</mosaic_0001>

<llo_original>
// kernel: tpu_custom_call.1
$region0: #{tpu_custom_call.1}
  #allocation0 [shape = 'u32[]', space=smem, size = 0x4, offset = 0x4, fixed_abs, tag = 'smem constant byte address 0x4 - core index']
  #allocation1 [shape = 'u32[144,128]{1,0:T(1,128)}', space=vmem, size = 0x12000, scoped, tag = 'internal scratch']
  %s0 = inlined_call_operand.hbm [shape: f32[4,512], index: 0, kind: input, shape index: {}]
  %s1 = inlined_call_operand.hbm [shape: f32[4,512], index: 1, kind: output, shape index: {0}]
  %s2 = inlined_call_operand.hbm [shape: f32[4,512], index: 2, kind: output, shape index: {1}]
  %3 = xla_tuple %s1, %s2
  %s4 = sld [smem:[#allocation0]]
  $region26: #{tpu_custom_call.1} parent=0
    _
  %s6 = ssub.s32 1, %s4
  %s7 = scalar_select 0, %s6, %s4
  $region1: #{tpu_custom_call.1} parent=0
    #allocation2 [shape = 'u8[8192]{0}', space=vmem, size = 0x2000, scoped, tag = 'input window, operand 0, single buffered']
    #allocation3 [shape = 's32[1]{0}', space=sflag, size = 0x4, scoped, tag = 'scoped memory for tpu_custom_call.1']
    #allocation4 [shape = 's32[1]{0}', space=sflag, size = 0x4, scoped, tag = 'scoped memory for tpu_custom_call.1']
    #allocation5 [shape = 'u8[8192]{0}', space=vmem, size = 0x2000, scoped, tag = 'output window, operand 0, single buffered']
    #allocation6 [shape = 'u8[8192]{0}', space=vmem, size = 0x2000, scoped, tag = 'output window, operand 1, single buffered']
    #allocation7 [shape = 's32[1]{0}', space=sflag, size = 0x4, scoped, tag = 'scoped memory for tpu_custom_call.1']
    %8 = vsyncpa [#allocation3], 0
    %9 = vsyncpa [#allocation4], 0
    %10 = vsyncpa [#allocation7], 0
    // Predicated region
    $region2: #{tpu_custom_call.1} parent=1 // pred_check
      _
    $region3: #{tpu_custom_call.1} parent=1 // pred_check_branch
      %12 = sbr.rel (0) target = $region5
    $region4: #{tpu_custom_call.1} parent=1 // pred_region
      %s14 = ssub.s32 256, 256
      %15 = vsyncadd [#allocation3], %s14
      %s17 = sshll.u32 [#allocation2], 4
      %s18 = int_to_ptr.vmem [resolvable:$true] %s17
      %20 = dma.hbm_to_vmem [thread:$0]  %s0, 256, %s18, [#allocation3]
    $region5: #{tpu_custom_call.1} parent=1 // pred_fallthru
      _
    // Predicated region
    $region6: #{tpu_custom_call.1} parent=1 // pred_check
      _
    $region7: #{tpu_custom_call.1} parent=1 // pred_check_branch
      %22 = sbr.rel (0) target = $region9
    $region8: #{tpu_custom_call.1} parent=1 // pred_region
      %23 = dma.done [#allocation3], 256
    $region9: #{tpu_custom_call.1} parent=1 // pred_fallthru
      _
    %v24 = vld [vmem:[#allocation2] sm:$0xff]
    %v25 = vld [vmem:[#allocation2 + $0x8] sm:$0xff]
    %v26 = vmul.f32 %v24, 5080.0
    %v27 = vmul.f32 %v25, 5080.0
    %v28 = vmax.f32 %v26, 0.0
    %v29 = vmax.f32 %v27, 0.0
    %v30 = vmin.f32 %v28, 127.0
    %v31 = vmin.f32 %v29, 127.0
    %v32 = vround.ne.pseudo %v30
    %v33 = vround.ne.pseudo %v31
    %v34 = vmul.f32 %v32, 0.0001968504
    %v35 = vmul.f32 %v33, 0.0001968504
    %v36 = vsub.f32 %v24, 0.025
    %v37 = vsub.f32 %v25, 0.025
    %v38 = vmul.f32 %v36, 130.25641
    %v39 = vmul.f32 %v37, 130.25641
    %v40 = vmax.f32 %v38, 0.0
    %v41 = vmax.f32 %v39, 0.0
    %v42 = vmin.f32 %v40, 127.0
    %v43 = vmin.f32 %v41, 127.0
    %v44 = vround.ne.pseudo %v42
    %v45 = vround.ne.pseudo %v43
    %v46 = vmul.f32 %v44, 0.0076771653
    %v47 = vmul.f32 %v45, 0.0076771653
    %48 = vst [vmem:[#allocation5] sm:$0xff] %v34
    %49 = vst [vmem:[#allocation5 + $0x8] sm:$0xff] %v35
    %50 = vst [vmem:[#allocation6] sm:$0xff] %v46
    %51 = vst [vmem:[#allocation6 + $0x8] sm:$0xff] %v47
    // Predicated region
    $region10: #{tpu_custom_call.1} parent=1 // pred_check
      _
    $region11: #{tpu_custom_call.1} parent=1 // pred_check_branch
      %53 = sbr.rel (0) target = $region13
    $region12: #{tpu_custom_call.1} parent=1 // pred_region
      %s55 = ssub.s32 256, 256
      %56 = vsyncadd [#allocation4], %s55
      %s58 = sshll.u32 [#allocation5], 4
      %s59 = int_to_ptr.vmem [resolvable:$true] %s58
      %61 = dma.vmem_to_hbm [thread:$0]  %s59, 256, %s1, [#allocation4]
    $region13: #{tpu_custom_call.1} parent=1 // pred_fallthru
      _
    // Predicated region
    $region14: #{tpu_custom_call.1} parent=1 // pred_check
      _
    $region15: #{tpu_custom_call.1} parent=1 // pred_check_branch
      %63 = sbr.rel (0) target = $region17
    $region16: #{tpu_custom_call.1} parent=1 // pred_region
      %s65 = ssub.s32 256, 256
      %66 = vsyncadd [#allocation7], %s65
      %s68 = sshll.u32 [#allocation6], 4
      %s69 = int_to_ptr.vmem [resolvable:$true] %s68
      %71 = dma.vmem_to_hbm [thread:$0]  %s69, 256, %s2, [#allocation7]
    $region17: #{tpu_custom_call.1} parent=1 // pred_fallthru
      _
    // Predicated region
    $region18: #{tpu_custom_call.1} parent=1 // pred_check
      _
    $region19: #{tpu_custom_call.1} parent=1 // pred_check_branch
      %73 = sbr.rel (0) target = $region21
    $region20: #{tpu_custom_call.1} parent=1 // pred_region
      %74 = dma.done [#allocation4], 256
    $region21: #{tpu_custom_call.1} parent=1 // pred_fallthru
      _
    // Predicated region
    $region22: #{tpu_custom_call.1} parent=1 // pred_check
      _
    $region23: #{tpu_custom_call.1} parent=1 // pred_check_branch
      %76 = sbr.rel (0) target = $region25
    $region24: #{tpu_custom_call.1} parent=1 // pred_region
      %77 = dma.done [#allocation7], 256
    $region25: #{tpu_custom_call.1} parent=1 // pred_fallthru
      _
    %78 = vsyncpa [#allocation3], 1
    %79 = vsyncpa [#allocation4], 1
    %80 = vsyncpa [#allocation7], 1

</llo_original>
